<compile_context>
chip_gen: v7x
topology: tpu7x:2x2x1
jax: 0.10.0
libtpu: 0.0.40
codegen_flags: <defaults>
</compile_context>

<pallas_src>
import functools

import jax
import jax.numpy as jnp
from jax import lax
from jax.experimental import pallas as pl
from jax.experimental.pallas import tpu as pltpu


def _round_up(x, m):
    return -(-x // m) * m


def _bce_kernel(logits_ref, targets_ref, out_ref, acc_ref, *,
                rows_valid, cols_valid,
                n_row_tiles, n_col_tiles, n_red, col_split,
                mask_rows, mask_cols):
    i = pl.program_id(0)          # "parallel" axis (row stripes / column chunks)
    j = pl.program_id(1)          # "arbitrary" reduction axis

    @pl.when(j == 0)
    def _():
        acc_ref[...] = jnp.zeros_like(acc_ref)

    x = logits_ref[...].astype(jnp.float32)
    z = targets_ref[...].astype(jnp.float32)

    # Numerically stable BCE-with-logits (PyTorch formulation):
    #   loss = max(x, 0) - x*z + log1p(exp(-|x|))
    loss = jnp.maximum(x, 0.0) - x * z + jnp.log1p(jnp.exp(-jnp.abs(x)))
    rt, ct = loss.shape

    def fold(l):
        # Fold rows into 8 sublanes: pure VPU vreg adds, no XLU.
        return l.reshape(rt // 8, 8, ct).sum(axis=0)

    if col_split:
        gr = jnp.int32(0)                   # single row stripe
        gc = i * n_red + j                  # global column-tile index
        ghost = (2 * n_red) > n_col_tiles   # last chunk may re-read final tile
    else:
        gr = i
        gc = j
        ghost = False

    # Only tail tiles (and ghost tiles) pay for iota/compare/select masking.
    preds = []
    if mask_rows:
        preds.append(gr >= n_row_tiles - 1)
    if mask_cols or ghost:
        col_thresh = (n_col_tiles - 1) if mask_cols else n_col_tiles
        preds.append(gc >= col_thresh)

    if preds:
        needs_mask = preds[0]
        for p in preds[1:]:
            needs_mask = jnp.logical_or(needs_mask, p)

        @pl.when(needs_mask)
        def _():
            m = None
            if mask_rows:
                rid = lax.broadcasted_iota(jnp.int32, (rt, ct), 0)
                m = rid < (rows_valid - gr * rt)
            if mask_cols or ghost:
                cid = lax.broadcasted_iota(jnp.int32, (rt, ct), 1)
                cm = cid < (cols_valid - gc * ct)
                m = cm if m is None else jnp.logical_and(m, cm)
            acc_ref[...] += fold(jnp.where(m, loss, 0.0))

        @pl.when(jnp.logical_not(needs_mask))
        def _():
            acc_ref[...] += fold(loss)
    else:
        acc_ref[...] += fold(loss)

    @pl.when(j == pl.num_programs(1) - 1)
    def _():
        # Lane fold: add aligned 128-lane chunks -> lane-dense (8,128) partial.
        a = acc_ref[...]
        part = a[:, 0:128]
        for k in range(1, ct // 128):
            part = part + a[:, k * 128:(k + 1) * 128]
        out_ref[...] = part


def bce_with_logits_mean(logits, targets, *,
                         target_block_bytes=4 * 1024 * 1024,
                         max_lane_tile=32 * 1024):
    """Pallas TPU implementation of
    F.binary_cross_entropy_with_logits(logits, targets, weight=None,
                                       reduction='mean')."""
    assert logits.shape == targets.shape, (logits.shape, targets.shape)
    if logits.ndim == 1:
        logits = logits.reshape(1, -1)
        targets = targets.reshape(1, -1)
    elif logits.ndim != 2:
        logits = logits.reshape(-1, logits.shape[-1])
        targets = targets.reshape(-1, targets.shape[-1])
    B, C = logits.shape
    total_elems = B * C

    itemsizes = (jnp.dtype(logits.dtype).itemsize,
                 jnp.dtype(targets.dtype).itemsize)
    item_max = max(itemsizes)
    # Row-tile granularity = packed sublane count (8 f32, 16 bf16, 32 int8).
    row_align = 8 * (4 // min(itemsizes))

    max_lane_tile = max(128, (max_lane_tile // 128) * 128)
    C_pad128 = _round_up(C, 128)
    B_al = _round_up(B, row_align)

    # Lane (label) tile, then grow row tile toward ~target_block_bytes/block.
    ct = min(C_pad128, 2048, max_lane_tile)
    rt = (target_block_bytes // (ct * item_max)) // row_align * row_align
    rt = max(row_align, min(rt, B_al))
    # Skinny batches: widen the lane tile toward the byte target instead.
    if rt >= B_al and rt * ct * item_max < target_block_bytes:
        widened = (target_block_bytes // (rt * item_max)) // 128 * 128
        ct = max(ct, min(C_pad128, max_lane_tile, widened))

    n_rows = pl.cdiv(B, rt)
    n_cols = pl.cdiv(C, ct)

    # Guarantee >= 2 blocks on the "parallel" axis when possible (v7x megacore).
    col_split = False
    n_par, n_red = n_rows, n_cols
    if n_rows == 1:
        stripes = pl.cdiv(B, row_align)
        if stripes >= 2:
            rt = pl.cdiv(stripes, 2) * row_align
            n_rows = pl.cdiv(B, rt)
            n_par = n_rows
        elif n_cols >= 2:
            col_split = True
            n_par = 2
            n_red = pl.cdiv(n_cols, 2)

    mask_rows = (B % rt) != 0
    mask_cols = (C % ct) != 0

    if col_split:
        def in_idx(i, j, _nr=n_red, _nc=n_cols):
            # Ghost tiles (past the last real tile) clamp to the final tile;
            # the in-kernel column mask zeroes their contribution.
            return (0, jnp.minimum(i * _nr + j, _nc - 1))
    else:
        def in_idx(i, j):
            return (i, j)

    def out_idx(i, j):
        return (i, 0)

    kernel = functools.partial(
        _bce_kernel,
        rows_valid=B, cols_valid=C,
        n_row_tiles=n_rows, n_col_tiles=n_cols,
        n_red=n_red, col_split=col_split,
        mask_rows=mask_rows, mask_cols=mask_cols,
    )

    partials = pl.pallas_call(
        kernel,
        out_shape=jax.ShapeDtypeStruct((n_par * 8, 128), jnp.float32),
        grid_spec=pltpu.PrefetchScalarGridSpec(
            num_scalar_prefetch=0,
            grid=(n_par, n_red),
            in_specs=[
                pl.BlockSpec((rt, ct), in_idx),
                pl.BlockSpec((rt, ct), in_idx),
            ],
            out_specs=pl.BlockSpec((8, 128), out_idx),
            scratch_shapes=[pltpu.VMEM((8, ct), jnp.float32)],
        ),
        compiler_params=pltpu.CompilerParams(
            dimension_semantics=("parallel", "arbitrary"),
            vmem_limit_bytes=64 * 1024 * 1024,
        ),
    )(logits, targets)

    # reduction='mean': finish the tiny partial-sum reduce in the wrapper.
    inv_n = jnp.float32(1.0 / float(total_elems))   # exact double, rounded once
    return jnp.sum(partials) * inv_n


if __name__ == "__main__":
    # TODO(synk): optional `weight` tensor and reduction='sum'/'none' variants
    # are not wired up; module defaults (weight=None, reduction='mean') only.

    def ref_bce_mean(x, z):
        x = x.astype(jnp.float32)
        z = z.astype(jnp.float32)
        return jnp.mean(jnp.maximum(x, 0.0) - x * z +
                        jnp.log1p(jnp.exp(-jnp.abs(x))))

    key = jax.random.PRNGKey(0)
    cases = [
        ((8, 256), jnp.float32, {}),                        # aligned, single block
        ((20, 200), jnp.float32, {}),                       # tails on both axes, 2 row stripes
        ((16, 384), jnp.bfloat16, {}),                      # bf16 packed-row alignment
        ((4, 300), jnp.float32, dict(max_lane_tile=128)),   # skinny -> column split path
    ]
    for shape, dtype, kwargs in cases:
        key, k1, k2 = jax.random.split(key, 3)
        logits = jax.random.normal(k1, shape, dtype=jnp.float32).astype(dtype)
        targets = (jax.random.uniform(k2, shape) > 0.5).astype(dtype)

        loss = jax.block_until_ready(
            bce_with_logits_mean(logits, targets, **kwargs))
        ref = ref_bce_mean(logits, targets)
        assert jnp.allclose(loss, ref, rtol=1e-5, atol=1e-6), (
            shape, dtype, loss, ref)

    print("KERNEL_OK")
</pallas_src>

<mosaic_0001>
module attributes {stable_mosaic.version = 11 : i64} {
  func.func @_bce_kernel(%arg0: i32, %arg1: i32, %arg2: memref<8x256xf32, #tpu.memory_space<vmem>>, %arg3: memref<8x256xf32, #tpu.memory_space<vmem>>, %arg4: memref<8x128xf32, #tpu.memory_space<vmem>>, %arg5: memref<8x256xf32, #tpu.memory_space<vmem>>) attributes {dimension_semantics = [#tpu.dimension_semantics<parallel>, #tpu.dimension_semantics<arbitrary>], iteration_bounds = array<i64: 1, 1>, scalar_prefetch = 0 : i64, scratch_operands = 1 : i64, tpu.core_type = #tpu.core_type<tc>, window_params = [{transform_indices = @transform_0, window_bounds = array<i64: 8, 256>}, {transform_indices = @transform_1, window_bounds = array<i64: 8, 256>}, {transform_indices = @transform_2, window_bounds = array<i64: 8, 128>}]} {
    %c0_i32 = arith.constant 0 : i32
    %0 = arith.cmpi eq, %arg1, %c0_i32 : i32
    %1 = arith.extui %0 : i1 to i32
    %c0_i32_0 = arith.constant 0 : i32
    %2 = arith.cmpi ne, %1, %c0_i32_0 : i32
    scf.if %2 {
      %cst_12 = arith.constant 0.000000e+00 : f32
      %23 = vector.broadcast %cst_12 : f32 to vector<8x256xf32>
      %c0_13 = arith.constant 0 : index
      %c0_14 = arith.constant 0 : index
      %24 = vector.load %arg5[%c0_13, %c0_14] : memref<8x256xf32, #tpu.memory_space<vmem>>, vector<8x256xf32>
      tpu.vector_store %arg5[%c0_13, %c0_14], %23 {strides = array<i32>} : memref<8x256xf32, #tpu.memory_space<vmem>>, vector<8x256xf32>,
    } else {
    }
    %c0 = arith.constant 0 : index
    %c0_1 = arith.constant 0 : index
    %3 = vector.load %arg2[%c0, %c0_1] : memref<8x256xf32, #tpu.memory_space<vmem>>, vector<8x256xf32>
    %c0_2 = arith.constant 0 : index
    %c0_3 = arith.constant 0 : index
    %4 = vector.load %arg3[%c0_2, %c0_3] : memref<8x256xf32, #tpu.memory_space<vmem>>, vector<8x256xf32>
    %cst = arith.constant 0.000000e+00 : f32
    %5 = vector.broadcast %cst : f32 to vector<8x256xf32>
    %6 = arith.maximumf %3, %5 : vector<8x256xf32>
    %7 = arith.mulf %3, %4 : vector<8x256xf32>
    %8 = arith.subf %6, %7 : vector<8x256xf32>
    %9 = math.absf %3 : vector<8x256xf32>
    %cst_4 = arith.constant 0.000000e+00 : f32
    %10 = vector.broadcast %cst_4 : f32 to vector<8x256xf32>
    %11 = arith.subf %10, %9 : vector<8x256xf32>
    %12 = math.exp %11 : vector<8x256xf32>
    %13 = math.log1p %12 : vector<8x256xf32>
    %14 = arith.addf %8, %13 : vector<8x256xf32>
    %c0_5 = arith.constant 0 : index
    %c0_6 = arith.constant 0 : index
    %15 = vector.load %arg5[%c0_5, %c0_6] : memref<8x256xf32, #tpu.memory_space<vmem>>, vector<8x256xf32>
    %16 = vector.shape_cast %14 : vector<8x256xf32> to vector<1x8x256xf32>
    %cst_7 = arith.constant dense<0.000000e+00> : vector<8x256xf32>
    %17 = vector.multi_reduction <add>, %16, %cst_7 [0] : vector<1x8x256xf32> to vector<8x256xf32>
    %18 = arith.addf %15, %17 : vector<8x256xf32>
    %c0_8 = arith.constant 0 : index
    %c0_9 = arith.constant 0 : index
    %19 = vector.load %arg5[%c0_8, %c0_9] : memref<8x256xf32, #tpu.memory_space<vmem>>, vector<8x256xf32>
    tpu.vector_store %arg5[%c0_8, %c0_9], %18 {strides = array<i32>} : memref<8x256xf32, #tpu.memory_space<vmem>>, vector<8x256xf32>,
    %c0_i32_10 = arith.constant 0 : i32
    %20 = arith.cmpi eq, %arg1, %c0_i32_10 : i32
    %21 = arith.extui %20 : i1 to i32
    %c0_i32_11 = arith.constant 0 : i32
    %22 = arith.cmpi ne, %21, %c0_i32_11 : i32
    scf.if %22 {
      %c0_12 = arith.constant 0 : index
      %c0_13 = arith.constant 0 : index
      %23 = vector.load %arg5[%c0_12, %c0_13] : memref<8x256xf32, #tpu.memory_space<vmem>>, vector<8x256xf32>
      %24 = vector.extract_strided_slice %23 {offsets = [0, 0], sizes = [8, 128], strides = [1, 1]} : vector<8x256xf32> to vector<8x128xf32>
      %25 = vector.extract_strided_slice %23 {offsets = [0, 128], sizes = [8, 128], strides = [1, 1]} : vector<8x256xf32> to vector<8x128xf32>
      %26 = arith.addf %24, %25 : vector<8x128xf32>
      %c0_14 = arith.constant 0 : index
      %c0_15 = arith.constant 0 : index
      %27 = vector.load %arg4[%c0_14, %c0_15] : memref<8x128xf32, #tpu.memory_space<vmem>>, vector<8x128xf32>
      tpu.vector_store %arg4[%c0_14, %c0_15], %26 {strides = array<i32>} : memref<8x128xf32, #tpu.memory_space<vmem>>, vector<8x128xf32>,
    } else {
    }
    return
  }
  func.func @transform_0(%arg0: i32, %arg1: i32) -> (i32, i32) {
    %c0_i32 = arith.constant 0 : i32
    return %arg0, %arg1 : i32, i32
  }
  func.func @transform_1(%arg0: i32, %arg1: i32) -> (i32, i32) {
    %c0_i32 = arith.constant 0 : i32
    return %arg0, %arg1 : i32, i32
  }
  func.func @transform_2(%arg0: i32, %arg1: i32) -> (i32, i32) {
    %c0_i32 = arith.constant 0 : i32
    %c0_i32_0 = arith.constant 0 : i32
    return %arg0, %c0_i32 : i32, i32
  }
}

</mosaic_0001>

<llo_original>
// kernel: tpu_custom_call.1
$region0: #{tpu_custom_call.1}
  #allocation0 [shape = 'u32[]', space=smem, size = 0x4, offset = 0x4, fixed_abs, tag = 'smem constant byte address 0x4 - core index']
  #allocation1 [shape = 'u32[144,128]{1,0:T(1,128)}', space=vmem, size = 0x12000, scoped, tag = 'internal scratch']
  #allocation2 [shape = 'f32[8,256]{1,0:T(8,128)}', space=vmem, size = 0x2000, scoped, tag = 'scratch operand']
  %s0 = inlined_call_operand.hbm [shape: f32[8,256], index: 0, kind: input, shape index: {}]
  %s1 = inlined_call_operand.hbm [shape: f32[8,256], index: 1, kind: input, shape index: {}]
  %s2 = inlined_call_operand.hbm [shape: f32[8,128], index: 2, kind: output, shape index: {}]
  %s3 = sld [smem:[#allocation0]]
  $region34: #{tpu_custom_call.1} parent=0
    _
  %s5 = ssub.s32 1, %s3
  %s6 = scalar_select 0, %s5, %s3
  $region1: #{tpu_custom_call.1} parent=0
    #allocation3 [shape = 'u8[8192]{0}', space=vmem, size = 0x2000, scoped, tag = 'input window, operand 0, single buffered']
    #allocation4 [shape = 's32[1]{0}', space=sflag, size = 0x4, scoped, tag = 'scoped memory for tpu_custom_call.1']
    #allocation5 [shape = 's32[1]{0}', space=sflag, size = 0x4, scoped, tag = 'scoped memory for tpu_custom_call.1']
    #allocation6 [shape = 'u8[8192]{0}', space=vmem, size = 0x2000, scoped, tag = 'input window, operand 1, single buffered']
    #allocation7 [shape = 's32[1]{0}', space=sflag, size = 0x4, scoped, tag = 'scoped memory for tpu_custom_call.1']
    #allocation8 [shape = 'u8[4096]{0}', space=vmem, size = 0x1000, scoped, tag = 'output window, operand 0, single buffered']
    %7 = vsyncpa [#allocation4], 0
    %8 = vsyncpa [#allocation7], 0
    %9 = vsyncpa [#allocation5], 0
    // Predicated region
    $region2: #{tpu_custom_call.1} parent=1 // pred_check
      _
    $region3: #{tpu_custom_call.1} parent=1 // pred_check_branch
      %11 = sbr.rel (0) target = $region5
    $region4: #{tpu_custom_call.1} parent=1 // pred_region
      %s13 = ssub.s32 256, 256
      %14 = vsyncadd [#allocation4], %s13
      %s16 = sshll.u32 [#allocation3], 4
      %s17 = int_to_ptr.vmem [resolvable:$true] %s16
      %19 = dma.hbm_to_vmem [thread:$0]  %s0, 256, %s17, [#allocation4]
    $region5: #{tpu_custom_call.1} parent=1 // pred_fallthru
      _
    // Predicated region
    $region6: #{tpu_custom_call.1} parent=1 // pred_check
      _
    $region7: #{tpu_custom_call.1} parent=1 // pred_check_branch
      %21 = sbr.rel (0) target = $region9
    $region8: #{tpu_custom_call.1} parent=1 // pred_region
      %s23 = ssub.s32 256, 256
      %24 = vsyncadd [#allocation7], %s23
      %s26 = sshll.u32 [#allocation6], 4
      %s27 = int_to_ptr.vmem [resolvable:$true] %s26
      %29 = dma.hbm_to_vmem [thread:$0]  %s1, 256, %s27, [#allocation7]
    $region9: #{tpu_custom_call.1} parent=1 // pred_fallthru
      _
    // Predicated region
    $region10: #{tpu_custom_call.1} parent=1 // pred_check
      _
    $region11: #{tpu_custom_call.1} parent=1 // pred_check_branch
      %31 = sbr.rel (0) target = $region13
    $region12: #{tpu_custom_call.1} parent=1 // pred_region
      %32 = dma.done [#allocation4], 256
    $region13: #{tpu_custom_call.1} parent=1 // pred_fallthru
      _
    // Predicated region
    $region14: #{tpu_custom_call.1} parent=1 // pred_check
      _
    $region15: #{tpu_custom_call.1} parent=1 // pred_check_branch
      %34 = sbr.rel (0) target = $region17
    $region16: #{tpu_custom_call.1} parent=1 // pred_region
      %35 = dma.done [#allocation7], 256
    $region17: #{tpu_custom_call.1} parent=1 // pred_fallthru
      _
    %p36 = scmp.eq.s32.totalorder 0, 0
    // Predicated region
    $region18: #{tpu_custom_call.1} parent=1 // pred_check
      %p37 = pneg %p36
    $region19: #{tpu_custom_call.1} parent=1 // pred_check_branch
      %39 = sbr.rel (%p37) target = $region21
    $region20: #{tpu_custom_call.1} parent=1 // pred_region
      %40 = vst [vmem:[#allocation2] sm:$0xff] 0.0
      %41 = vst [vmem:[#allocation2 + $0x8] sm:$0xff] 0.0
    $region21: #{tpu_custom_call.1} parent=1 // pred_fallthru
      _
    %v42 = vld [vmem:[#allocation3] sm:$0xff]
    %v43 = vld [vmem:[#allocation3 + $0x8] sm:$0xff]
    %v44 = vld [vmem:[#allocation6] sm:$0xff]
    %v45 = vld [vmem:[#allocation6 + $0x8] sm:$0xff]
    %v46 = vmax.f32 %v42, 0.0
    %v47 = vmax.f32 %v43, 0.0
    %v48 = vmul.f32 %v42, %v44
    %v49 = vmul.f32 %v43, %v45
    %v50 = vsub.f32 %v46, %v48
    %v51 = vsub.f32 %v47, %v49
    %v52 = vand.u32 2147483647, %v42
    %v53 = vand.u32 2147483647, %v43
    %v54 = vsub.f32 0.0, %v52
    %v55 = vsub.f32 0.0, %v53
    %v56 = vmul.f32 %v54, 1.442695
    %v57 = vpow.pop %v56
    %v58 = vmul.f32 %v55, 1.442695
    %v59 = vpow.pop %v58
    %v60 = vadd.f32 %v57, 1.0
    %v61 = vlog2.pop %v60
    %v62 = vmul.f32 %v61, 0.6931472
    %v63 = vmul.f32 -0.5, %v57
    %v64 = vadd.f32 %v63, 1.0
    %v65 = vmul.f32 %v64, %v57
    %v66 = vand.u32 2147483647, %v57
    %vm67 = vcmp.lt.f32.partialorder %v66, 0.0004427343
    %v68 = vsel %vm67, %v65, %v62
    %v69 = vadd.f32 %v59, 1.0
    %v70 = vlog2.pop %v69
    %v71 = vmul.f32 %v70, 0.6931472
    %v72 = vmul.f32 -0.5, %v59
    %v73 = vadd.f32 %v72, 1.0
    %v74 = vmul.f32 %v73, %v59
    %v75 = vand.u32 2147483647, %v59
    %vm76 = vcmp.lt.f32.partialorder %v75, 0.0004427343
    %v77 = vsel %vm76, %v74, %v71
    %v78 = vadd.f32 %v50, %v68
    %v79 = vadd.f32 %v51, %v77
    %v80 = vld [vmem:[#allocation2] sm:$0xff]
    %v81 = vld [vmem:[#allocation2 + $0x8] sm:$0xff]
    %v82 = vadd.f32 %v78, 0.0
    %v83 = vadd.f32 %v79, 0.0
    %v84 = vadd.f32 %v80, %v82
    %v85 = vadd.f32 %v81, %v83
    %86 = vst [vmem:[#allocation2] sm:$0xff] %v84
    %87 = vst [vmem:[#allocation2 + $0x8] sm:$0xff] %v85
    // Predicated region
    $region22: #{tpu_custom_call.1} parent=1 // pred_check
      %p88 = pneg %p36
    $region23: #{tpu_custom_call.1} parent=1 // pred_check_branch
      %90 = sbr.rel (%p88) target = $region25
    $region24: #{tpu_custom_call.1} parent=1 // pred_region
      %v91 = vld [vmem:[#allocation2] sm:$0xff]
      %v92 = vld [vmem:[#allocation2 + $0x8] sm:$0xff]
      %v93 = vadd.f32 %v91, %v92
      %94 = vst [vmem:[#allocation8] sm:$0xff] %v93
    $region25: #{tpu_custom_call.1} parent=1 // pred_fallthru
      _
    // Predicated region
    $region26: #{tpu_custom_call.1} parent=1 // pred_check
      _
    $region27: #{tpu_custom_call.1} parent=1 // pred_check_branch
      %96 = sbr.rel (0) target = $region29
    $region28: #{tpu_custom_call.1} parent=1 // pred_region
      %s98 = ssub.s32 128, 128
      %99 = vsyncadd [#allocation5], %s98
      %s101 = sshll.u32 [#allocation8], 4
      %s102 = int_to_ptr.vmem [resolvable:$true] %s101
      %104 = dma.vmem_to_hbm [thread:$0]  %s102, 128, %s2, [#allocation5]
    $region29: #{tpu_custom_call.1} parent=1 // pred_fallthru
      _
    // Predicated region
    $region30: #{tpu_custom_call.1} parent=1 // pred_check
      _
    $region31: #{tpu_custom_call.1} parent=1 // pred_check_branch
      %106 = sbr.rel (0) target = $region33
    $region32: #{tpu_custom_call.1} parent=1 // pred_region
      %107 = dma.done [#allocation5], 128
    $region33: #{tpu_custom_call.1} parent=1 // pred_fallthru
      _
    %108 = vsyncpa [#allocation4], 1
    %109 = vsyncpa [#allocation7], 1
    %110 = vsyncpa [#allocation5], 1

</llo_original>
